<compile_context>
chip_gen: v7x
topology: tpu7x:2x2x1
jax: 0.10.0
libtpu: 0.0.40
codegen_flags: <defaults>
</compile_context>

<pallas_src>
import math
import functools

import jax
import jax.numpy as jnp
from jax import lax
from jax.experimental import pallas as pl
from jax.experimental.pallas import tpu as pltpu


def _tcn_kernel(x_ref, w_ref, b_ref, o_ref, *,
                T, K, dilation, pad, b_blk, approximate):
    # x_ref: (b_blk, T, cb) input tile; w_ref: (K, cb) taps; b_ref: (1, cb) bias;
    # o_ref: (b_blk, T, cb) output tile.
    cb = x_ref.shape[-1]

    # Hoisted once per grid step (JAX does not CSE broadcast/iota inside loops).
    w_all = w_ref[...].astype(jnp.float32)                               # (K, cb)
    bias_full = jnp.broadcast_to(b_ref[...].astype(jnp.float32), (T, cb))
    t_idx = lax.broadcasted_iota(jnp.int32, (T, cb), 0)

    for bb in range(b_blk):                      # small static unroll over batches
        xv = x_ref[bb].astype(jnp.float32)       # one vld pass; f32 accumulation
        acc = bias_full
        for k in range(K):
            s = k * dilation - pad               # temporal shift of tap k
            if abs(s) >= T:
                continue                         # tap never touches a valid row
            if s == 0:
                xk = xv
            else:
                # Shift along time on the XLU; zero only the <= pad rows that
                # wrapped around (replaces the old f32 staging scratch + store).
                xk = pltpu.roll(xv, shift=(-s) % T, axis=0)
                if s > 0:
                    xk = jnp.where(t_idx < T - s, xk, 0.0)
                else:
                    xk = jnp.where(t_idx >= -s, xk, 0.0)
            acc = acc + xk * w_all[k:k + 1, :]

        if approximate:
            # tanh-approx GELU: transcendental lands in the otherwise-idle EUP
            # slot -> preferred when the erf polynomial makes the kernel
            # VALU-bound (v6e/v7x).
            c0 = math.sqrt(2.0 / math.pi)
            g = 0.5 * acc * (1.0 + jnp.tanh(c0 * (acc + 0.044715 * acc * acc * acc)))
        else:
            # exact erf GELU -- PyTorch nn.GELU() default semantics.
            g = 0.5 * acc * (1.0 + lax.erf(acc * (1.0 / math.sqrt(2.0))))
        o_ref[bb] = g.astype(o_ref.dtype)


def _vmem_capacity_bytes():
    try:
        return int(pltpu.get_tpu_info().vmem_capacity_bytes)
    except Exception:
        return 64 * 1024 * 1024                  # conservative (v7x) fallback


def _step_vmem_bytes(b_blk, T, c_blk, itemsize):
    """Per-grid-step VMEM estimate: double-buffered in/out tiles + live f32 values."""
    io = 2 * 2 * b_blk * T * c_blk * itemsize    # input + output, double-buffered
    live = 6 * T * c_blk * 4                     # xv / xk / acc / temps for one batch row
    params = 4 * 16 * c_blk * 4                  # taps, bias, iota (generous)
    return io + live + params


def _pick_tiles(B, C, T, itemsize, budget):
    """Choose (b_blk, c_blk): lane-dense channel tiles, batch-blocked small tiles."""
    if C <= 128:
        c_blk = C                                # lane tile equals full C (masked stores)
    else:
        cands = [cb for cb in (1024, 768, 512, 384, 256, 128) if cb <= C]
        fitting = [cb for cb in cands
                   if _step_vmem_bytes(1, T, cb, itemsize) <= budget]
        if not fitting:
            c_blk = 128
        else:
            divs = [cb for cb in fitting if C % cb == 0]
            c_blk = (divs or fitting)[0]         # lists are descending -> largest
    # Block multiple batches per step when per-step tiles are tiny.
    target_tile_bytes = 2 * 1024 * 1024
    b_blk = 1
    for bb in range(1, min(B, 8) + 1):
        if B % bb != 0:
            continue
        if _step_vmem_bytes(bb, T, c_blk, itemsize) > budget:
            break
        b_blk = bb
        if bb * T * c_blk * itemsize >= target_tile_bytes:
            break
    return b_blk, c_blk


def tcn_t_dim_mixed(x, weight, bias, *, kernel_size=3, dilation=1,
                    approximate_gelu=False):
    """x: (B, T, C); weight: (C, 1, K) (PyTorch depthwise Conv1d layout); bias: (C,)."""
    B, T, C = x.shape
    K = kernel_size
    if ((K - 1) * dilation) % 2 != 0:
        # PyTorch Conv1d with padding=(K-1)*dilation//2 would return T-1 samples here.
        raise NotImplementedError(
            "only even (kernel_size - 1) * dilation (e.g. odd kernel_size) is supported")
    pad = (K - 1) * dilation // 2

    itemsize = jnp.dtype(x.dtype).itemsize
    vmem_cap = _vmem_capacity_bytes()
    budget = int(0.70 * vmem_cap)
    b_blk, c_blk = _pick_tiles(B, C, T, itemsize, budget)
    n_b = B // b_blk
    n_c = pl.cdiv(C, c_blk)                      # partial last block handled by Pallas

    # Layout-only glue: taps (C,1,K) -> (K,C), bias -> (1,C).
    w_kc = jnp.transpose(weight[:, 0, :], (1, 0))
    b_2d = bias.reshape(1, C)

    kernel = functools.partial(
        _tcn_kernel, T=T, K=K, dilation=dilation, pad=pad, b_blk=b_blk,
        approximate=approximate_gelu)

    # Scoped-VMEM limit: actual estimate + headroom, capped at 85% of the device's
    # physical VMEM (64 MiB on v7x, 128 MiB on v5e/v6e).
    est = _step_vmem_bytes(b_blk, T, c_blk, itemsize)
    vmem_limit = int(min(max(2 * est, 16 * 1024 * 1024), int(0.85 * vmem_cap)))

    return pl.pallas_call(
        kernel,
        out_shape=jax.ShapeDtypeStruct((B, T, C), x.dtype),
        grid_spec=pltpu.PrefetchScalarGridSpec(
            num_scalar_prefetch=0,
            # Channels outermost: weight/bias block indices are constant across all
            # consecutive inner (batch) steps, so their re-DMA is elided.
            grid=(n_c, n_b),
            in_specs=[
                pl.BlockSpec((b_blk, T, c_blk), lambda c, b: (b, 0, c)),
                pl.BlockSpec((K, c_blk), lambda c, b: (0, c)),
                pl.BlockSpec((1, c_blk), lambda c, b: (0, c)),
            ],
            out_specs=pl.BlockSpec((b_blk, T, c_blk), lambda c, b: (b, 0, c)),
        ),
        compiler_params=pltpu.CompilerParams(
            dimension_semantics=("parallel", "parallel"),
            vmem_limit_bytes=vmem_limit),
    )(x, w_kc, b_2d)


def _reference(x, weight, bias, *, kernel_size=3, dilation=1, approximate_gelu=False):
    """Pure-JAX reference of the PyTorch forward (depthwise conv1d + GELU)."""
    B, T, C = x.shape
    pad = (kernel_size - 1) * dilation // 2
    xpad = jnp.pad(x, ((0, 0), (pad, pad), (0, 0))).astype(jnp.float32)
    out = jnp.zeros((B, T, C), jnp.float32)
    for k in range(kernel_size):
        out = out + xpad[:, k * dilation: k * dilation + T, :] * weight[:, 0, k][None, None, :]
    out = out + bias[None, None, :]
    if approximate_gelu:
        c0 = math.sqrt(2.0 / math.pi)
        return 0.5 * out * (1.0 + jnp.tanh(c0 * (out + 0.044715 * out * out * out)))
    return 0.5 * out * (1.0 + lax.erf(out / math.sqrt(2.0)))


if __name__ == "__main__":
    key = jax.random.PRNGKey(0)
    configs = [
        # lane-dense channel tile, exact GELU (PyTorch default semantics)
        dict(B=2, T=16, C=128, kernel_size=3, dilation=1, approximate_gelu=False),
        # small-C fallback + dilation > 1 exercises the boundary masking
        dict(B=2, T=16, C=8, kernel_size=3, dilation=2, approximate_gelu=False),
        # wider kernel + larger channel tile
        dict(B=2, T=16, C=256, kernel_size=5, dilation=1, approximate_gelu=False),
        # EUP tanh-approx GELU path
        dict(B=2, T=16, C=128, kernel_size=3, dilation=1, approximate_gelu=True),
    ]
    for cfg in configs:
        B, T, C = cfg["B"], cfg["T"], cfg["C"]
        K, d, approx = cfg["kernel_size"], cfg["dilation"], cfg["approximate_gelu"]
        key, kx, kw, kb = jax.random.split(key, 4)

        x = jax.random.normal(kx, (B, T, C), dtype=jnp.float32)
        # synthetic Conv1d params, shapes matching nn.Conv1d(C, C, K, groups=C)
        bound = 1.0 / math.sqrt(K)
        weight = jax.random.uniform(kw, (C, 1, K), jnp.float32, -bound, bound)
        bias = jax.random.uniform(kb, (C,), jnp.float32, -bound, bound)

        out = tcn_t_dim_mixed(x, weight, bias, kernel_size=K, dilation=d,
                              approximate_gelu=approx)
        out = jax.block_until_ready(out)

        ref = _reference(x, weight, bias, kernel_size=K, dilation=d,
                         approximate_gelu=approx)
        assert out.shape == (B, T, C)
        assert jnp.allclose(out, ref, atol=1e-4, rtol=1e-4), f"mismatch vs reference: {cfg}"

    print("KERNEL_OK")
</pallas_src>

<mosaic_0001>
module attributes {stable_mosaic.version = 11 : i64} {
  func.func @_tcn_kernel(%arg0: i32, %arg1: i32, %arg2: memref<2x16x128xf32, #tpu.memory_space<vmem>>, %arg3: memref<3x128xf32, #tpu.memory_space<vmem>>, %arg4: memref<1x128xf32, #tpu.memory_space<vmem>>, %arg5: memref<2x16x128xf32, #tpu.memory_space<vmem>>) attributes {dimension_semantics = [#tpu.dimension_semantics<parallel>, #tpu.dimension_semantics<parallel>], iteration_bounds = array<i64: 1, 1>, scalar_prefetch = 0 : i64, scratch_operands = 0 : i64, tpu.core_type = #tpu.core_type<tc>, window_params = [{transform_indices = @transform_0, window_bounds = array<i64: 2, 16, 128>}, {transform_indices = @transform_1, window_bounds = array<i64: 3, 128>}, {transform_indices = @transform_2, window_bounds = array<i64: 1, 128>}, {transform_indices = @transform_3, window_bounds = array<i64: 2, 16, 128>}]} {
    %c0 = arith.constant 0 : index
    %c0_0 = arith.constant 0 : index
    %0 = vector.load %arg3[%c0, %c0_0] : memref<3x128xf32, #tpu.memory_space<vmem>>, vector<3x128xf32>
    %c0_1 = arith.constant 0 : index
    %c0_2 = arith.constant 0 : index
    %1 = vector.load %arg4[%c0_1, %c0_2] : memref<1x128xf32, #tpu.memory_space<vmem>>, vector<1x128xf32>
    %2 = vector.shape_cast %1 : vector<1x128xf32> to vector<1x128xf32>
    %3 = vector.broadcast %2 : vector<1x128xf32> to vector<16x128xf32>
    %4 = tpu.iota {dimensions = array<i32: 0>} : vector<16x128xi32>
    %c0_3 = arith.constant 0 : index
    %c0_4 = arith.constant 0 : index
    %c0_5 = arith.constant 0 : index
    %5 = vector.load %arg2[%c0_3, %c0_4, %c0_5] : memref<2x16x128xf32, #tpu.memory_space<vmem>>, vector<1x16x128xf32>
    %6 = vector.shape_cast %5 : vector<1x16x128xf32> to vector<16x128xf32>
    %c1_i32 = arith.constant 1 : i32
    %7 = tpu.dynamic_rotate %6 by %c1_i32 dim 0 : vector<16x128xf32>, i32 -> vector<16x128xf32>
    %c1_i32_6 = arith.constant 1 : i32
    %8 = vector.broadcast %c1_i32_6 : i32 to vector<16x128xi32>
    %9 = arith.cmpi sge, %4, %8 : vector<16x128xi32>
    %cst = arith.constant 0.000000e+00 : f32
    %10 = vector.broadcast %cst : f32 to vector<16x128xf32>
    %11 = arith.select %9, %7, %10 : vector<16x128xi1>, vector<16x128xf32>
    %12 = vector.extract_strided_slice %0 {offsets = [0, 0], sizes = [1, 128], strides = [1, 1]} : vector<3x128xf32> to vector<1x128xf32>
    %13 = vector.broadcast %12 : vector<1x128xf32> to vector<16x128xf32>
    %14 = arith.mulf %11, %13 : vector<16x128xf32>
    %15 = arith.addf %3, %14 : vector<16x128xf32>
    %16 = vector.extract_strided_slice %0 {offsets = [1, 0], sizes = [1, 128], strides = [1, 1]} : vector<3x128xf32> to vector<1x128xf32>
    %17 = vector.broadcast %16 : vector<1x128xf32> to vector<16x128xf32>
    %18 = arith.mulf %6, %17 : vector<16x128xf32>
    %19 = arith.addf %15, %18 : vector<16x128xf32>
    %c15_i32 = arith.constant 15 : i32
    %20 = tpu.dynamic_rotate %6 by %c15_i32 dim 0 : vector<16x128xf32>, i32 -> vector<16x128xf32>
    %c15_i32_7 = arith.constant 15 : i32
    %21 = vector.broadcast %c15_i32_7 : i32 to vector<16x128xi32>
    %22 = arith.cmpi slt, %4, %21 : vector<16x128xi32>
    %cst_8 = arith.constant 0.000000e+00 : f32
    %23 = vector.broadcast %cst_8 : f32 to vector<16x128xf32>
    %24 = arith.select %22, %20, %23 : vector<16x128xi1>, vector<16x128xf32>
    %25 = vector.extract_strided_slice %0 {offsets = [2, 0], sizes = [1, 128], strides = [1, 1]} : vector<3x128xf32> to vector<1x128xf32>
    %26 = vector.broadcast %25 : vector<1x128xf32> to vector<16x128xf32>
    %27 = arith.mulf %24, %26 : vector<16x128xf32>
    %28 = arith.addf %19, %27 : vector<16x128xf32>
    %cst_9 = arith.constant 5.000000e-01 : f32
    %29 = vector.broadcast %cst_9 : f32 to vector<16x128xf32>
    %30 = arith.mulf %29, %28 : vector<16x128xf32>
    %cst_10 = arith.constant 0.707106769 : f32
    %31 = vector.broadcast %cst_10 : f32 to vector<16x128xf32>
    %32 = arith.mulf %28, %31 : vector<16x128xf32>
    %33 = math.erf %32 : vector<16x128xf32>
    %cst_11 = arith.constant 1.000000e+00 : f32
    %34 = vector.broadcast %cst_11 : f32 to vector<16x128xf32>
    %35 = arith.addf %34, %33 : vector<16x128xf32>
    %36 = arith.mulf %30, %35 : vector<16x128xf32>
    %c0_12 = arith.constant 0 : index
    %c0_13 = arith.constant 0 : index
    %c0_14 = arith.constant 0 : index
    %37 = vector.load %arg5[%c0_12, %c0_13, %c0_14] : memref<2x16x128xf32, #tpu.memory_space<vmem>>, vector<1x16x128xf32>
    %38 = vector.shape_cast %37 : vector<1x16x128xf32> to vector<16x128xf32>
    %39 = vector.shape_cast %36 : vector<16x128xf32> to vector<1x16x128xf32>
    tpu.vector_store %arg5[%c0_12, %c0_13, %c0_14], %39 {strides = array<i32>} : memref<2x16x128xf32, #tpu.memory_space<vmem>>, vector<1x16x128xf32>,
    %c1 = arith.constant 1 : index
    %c0_15 = arith.constant 0 : index
    %c0_16 = arith.constant 0 : index
    %40 = vector.load %arg2[%c1, %c0_15, %c0_16] : memref<2x16x128xf32, #tpu.memory_space<vmem>>, vector<1x16x128xf32>
    %41 = vector.shape_cast %40 : vector<1x16x128xf32> to vector<16x128xf32>
    %c1_i32_17 = arith.constant 1 : i32
    %42 = tpu.dynamic_rotate %41 by %c1_i32_17 dim 0 : vector<16x128xf32>, i32 -> vector<16x128xf32>
    %c1_i32_18 = arith.constant 1 : i32
    %43 = vector.broadcast %c1_i32_18 : i32 to vector<16x128xi32>
    %44 = arith.cmpi sge, %4, %43 : vector<16x128xi32>
    %cst_19 = arith.constant 0.000000e+00 : f32
    %45 = vector.broadcast %cst_19 : f32 to vector<16x128xf32>
    %46 = arith.select %44, %42, %45 : vector<16x128xi1>, vector<16x128xf32>
    %47 = vector.extract_strided_slice %0 {offsets = [0, 0], sizes = [1, 128], strides = [1, 1]} : vector<3x128xf32> to vector<1x128xf32>
    %48 = vector.broadcast %47 : vector<1x128xf32> to vector<16x128xf32>
    %49 = arith.mulf %46, %48 : vector<16x128xf32>
    %50 = arith.addf %3, %49 : vector<16x128xf32>
    %51 = vector.extract_strided_slice %0 {offsets = [1, 0], sizes = [1, 128], strides = [1, 1]} : vector<3x128xf32> to vector<1x128xf32>
    %52 = vector.broadcast %51 : vector<1x128xf32> to vector<16x128xf32>
    %53 = arith.mulf %41, %52 : vector<16x128xf32>
    %54 = arith.addf %50, %53 : vector<16x128xf32>
    %c15_i32_20 = arith.constant 15 : i32
    %55 = tpu.dynamic_rotate %41 by %c15_i32_20 dim 0 : vector<16x128xf32>, i32 -> vector<16x128xf32>
    %c15_i32_21 = arith.constant 15 : i32
    %56 = vector.broadcast %c15_i32_21 : i32 to vector<16x128xi32>
    %57 = arith.cmpi slt, %4, %56 : vector<16x128xi32>
    %cst_22 = arith.constant 0.000000e+00 : f32
    %58 = vector.broadcast %cst_22 : f32 to vector<16x128xf32>
    %59 = arith.select %57, %55, %58 : vector<16x128xi1>, vector<16x128xf32>
    %60 = vector.extract_strided_slice %0 {offsets = [2, 0], sizes = [1, 128], strides = [1, 1]} : vector<3x128xf32> to vector<1x128xf32>
    %61 = vector.broadcast %60 : vector<1x128xf32> to vector<16x128xf32>
    %62 = arith.mulf %59, %61 : vector<16x128xf32>
    %63 = arith.addf %54, %62 : vector<16x128xf32>
    %cst_23 = arith.constant 5.000000e-01 : f32
    %64 = vector.broadcast %cst_23 : f32 to vector<16x128xf32>
    %65 = arith.mulf %64, %63 : vector<16x128xf32>
    %cst_24 = arith.constant 0.707106769 : f32
    %66 = vector.broadcast %cst_24 : f32 to vector<16x128xf32>
    %67 = arith.mulf %63, %66 : vector<16x128xf32>
    %68 = math.erf %67 : vector<16x128xf32>
    %cst_25 = arith.constant 1.000000e+00 : f32
    %69 = vector.broadcast %cst_25 : f32 to vector<16x128xf32>
    %70 = arith.addf %69, %68 : vector<16x128xf32>
    %71 = arith.mulf %65, %70 : vector<16x128xf32>
    %c1_26 = arith.constant 1 : index
    %c0_27 = arith.constant 0 : index
    %c0_28 = arith.constant 0 : index
    %72 = vector.load %arg5[%c1_26, %c0_27, %c0_28] : memref<2x16x128xf32, #tpu.memory_space<vmem>>, vector<1x16x128xf32>
    %73 = vector.shape_cast %72 : vector<1x16x128xf32> to vector<16x128xf32>
    %74 = vector.shape_cast %71 : vector<16x128xf32> to vector<1x16x128xf32>
    tpu.vector_store %arg5[%c1_26, %c0_27, %c0_28], %74 {strides = array<i32>} : memref<2x16x128xf32, #tpu.memory_space<vmem>>, vector<1x16x128xf32>,
    return
  }
  func.func @transform_0(%arg0: i32, %arg1: i32) -> (i32, i32, i32) {
    %c0_i32 = arith.constant 0 : i32
    %c0_i32_0 = arith.constant 0 : i32
    return %arg1, %c0_i32, %arg0 : i32, i32, i32
  }
  func.func @transform_1(%arg0: i32, %arg1: i32) -> (i32, i32) {
    %c0_i32 = arith.constant 0 : i32
    %c0_i32_0 = arith.constant 0 : i32
    return %c0_i32, %arg0 : i32, i32
  }
  func.func @transform_2(%arg0: i32, %arg1: i32) -> (i32, i32) {
    %c0_i32 = arith.constant 0 : i32
    %c0_i32_0 = arith.constant 0 : i32
    return %c0_i32, %arg0 : i32, i32
  }
  func.func @transform_3(%arg0: i32, %arg1: i32) -> (i32, i32, i32) {
    %c0_i32 = arith.constant 0 : i32
    %c0_i32_0 = arith.constant 0 : i32
    return %arg1, %c0_i32, %arg0 : i32, i32, i32
  }
}

</mosaic_0001>

<llo_original>
// kernel: tpu_custom_call.1
$region0: #{tpu_custom_call.1}
  #allocation0 [shape = 'u32[]', space=smem, size = 0x4, offset = 0x4, fixed_abs, tag = 'smem constant byte address 0x4 - core index']
  #allocation1 [shape = 'u32[144,128]{1,0:T(1,128)}', space=vmem, size = 0x12000, scoped, tag = 'internal scratch']
  %s0 = inlined_call_operand.hbm [shape: f32[2,16,128], index: 0, kind: input, shape index: {}]
  %s1 = inlined_call_operand.hbm [shape: f32[3,128], index: 1, kind: input, shape index: {}]
  %s2 = inlined_call_operand.vmem [shape: f32[1,128], index: 2, kind: input, shape index: {}]
  %s3 = inlined_call_operand.hbm [shape: f32[2,16,128], index: 3, kind: output, shape index: {}]
  %s4 = sld [smem:[#allocation0]]
  $region30: #{tpu_custom_call.1} parent=0
    _
  %s6 = ssub.s32 1, %s4
  %s7 = scalar_select 0, %s6, %s4
  $region1: #{tpu_custom_call.1} parent=0
    #allocation2 [shape = 'u8[16384]{0}', space=vmem, size = 0x4000, scoped, tag = 'input window, operand 0, single buffered']
    #allocation3 [shape = 's32[1]{0}', space=sflag, size = 0x4, scoped, tag = 'scoped memory for tpu_custom_call.1']
    #allocation4 [shape = 's32[1]{0}', space=sflag, size = 0x4, scoped, tag = 'scoped memory for tpu_custom_call.1']
    #allocation5 [shape = 'u8[2048]{0}', space=vmem, size = 0x800, scoped, tag = 'input window, operand 1, single buffered']
    #allocation6 [shape = 's32[1]{0}', space=sflag, size = 0x4, scoped, tag = 'scoped memory for tpu_custom_call.1']
    #allocation7 [shape = 'u8[16384]{0}', space=vmem, size = 0x4000, scoped, tag = 'output window, operand 0, single buffered']
    %8 = vsyncpa [#allocation3], 0
    %9 = vsyncpa [#allocation6], 0
    %10 = vsyncpa [#allocation4], 0
    // Predicated region
    $region2: #{tpu_custom_call.1} parent=1 // pred_check
      _
    $region3: #{tpu_custom_call.1} parent=1 // pred_check_branch
      %12 = sbr.rel (0) target = $region5
    $region4: #{tpu_custom_call.1} parent=1 // pred_region
      %s14 = ssub.s32 512, 512
      %15 = vsyncadd [#allocation3], %s14
      %s16 = sshll.u32 [#allocation2], 4
      %s17 = int_to_ptr.vmem [resolvable:$true] %s16
      %22 = dma.hbm_to_vmem [thread:$0]  %s0, 512, %s17, [#allocation3], 128, 128, 8
    $region5: #{tpu_custom_call.1} parent=1 // pred_fallthru
      _
    // Predicated region
    $region6: #{tpu_custom_call.1} parent=1 // pred_check
      _
    $region7: #{tpu_custom_call.1} parent=1 // pred_check_branch
      %24 = sbr.rel (0) target = $region9
    $region8: #{tpu_custom_call.1} parent=1 // pred_region
      %s26 = ssub.s32 64, 64
      %27 = vsyncadd [#allocation6], %s26
      %s29 = sshll.u32 [#allocation5], 4
      %s30 = int_to_ptr.vmem [resolvable:$true] %s29
      %32 = dma.hbm_to_vmem [thread:$0]  %s1, 64, %s30, [#allocation6]
    $region9: #{tpu_custom_call.1} parent=1 // pred_fallthru
      _
    // Predicated region
    $region10: #{tpu_custom_call.1} parent=1 // pred_check
      _
    $region11: #{tpu_custom_call.1} parent=1 // pred_check_branch
      %34 = sbr.rel (0) target = $region13
    $region12: #{tpu_custom_call.1} parent=1 // pred_region
      _
    $region13: #{tpu_custom_call.1} parent=1 // pred_fallthru
      _
    // Predicated region
    $region14: #{tpu_custom_call.1} parent=1 // pred_check
      _
    $region15: #{tpu_custom_call.1} parent=1 // pred_check_branch
      %36 = sbr.rel (0) target = $region17
    $region16: #{tpu_custom_call.1} parent=1 // pred_region
      %37 = dma.done [#allocation3], 512
    $region17: #{tpu_custom_call.1} parent=1 // pred_fallthru
      _
    // Predicated region
    $region18: #{tpu_custom_call.1} parent=1 // pred_check
      _
    $region19: #{tpu_custom_call.1} parent=1 // pred_check_branch
      %39 = sbr.rel (0) target = $region21
    $region20: #{tpu_custom_call.1} parent=1 // pred_region
      %40 = dma.done [#allocation6], 64
    $region21: #{tpu_custom_call.1} parent=1 // pred_fallthru
      _
    %v41 = vld [vmem:[#allocation5] sm:$0x7]
    %v42 = vld [vmem:[%s2] sm:$0x1]
    %v44 = vlaneseq
    %v45 = vshrl.u32 %v44, 7
    %v46 = vsub.s32 0, %v45
    %v47 = vrot.slane %v42, %v46
    %v49 = vlaneseq
    %v50 = vshrl.u32 %v49, 7
    %v51 = vadd.s32 %v50, 8
    %v52 = vld [vmem:[#allocation2] sm:$0xff]
    %v53 = vld [vmem:[#allocation2 + $0x8] sm:$0xff]
    %v54 = vrot.slane %v52, 7
    %v55 = vrot.slane %v53, 7
    %vm56 = vcmp.lt.s32.totalorder %v50, 1
    %v57 = vsel %vm56, %v54, %v55
    %v58 = vsel %vm56, %v55, %v54
    %vm59 = vcmp.ge.s32.totalorder %v50, 1
    %vm60 = vcmp.ge.s32.totalorder %v51, 1
    %v61 = vsel %vm59, %v58, 0.0
    %v62 = vsel %vm60, %v57, 0.0
    %v63 = vlaneseq
    %v64 = vshrl.u32 %v63, 7
    %v65 = vsub.s32 0, %v64
    %v66 = vrot.slane %v41, %v65
    %v67 = vmul.f32 %v61, %v66
    %v68 = vmul.f32 %v62, %v66
    %v69 = vadd.f32 %v47, %v67
    %v70 = vadd.f32 %v47, %v68
    %v71 = vlaneseq
    %v72 = vshrl.u32 %v71, 7
    %v73 = vsub.s32 1, %v72
    %v74 = vrot.slane %v41, %v73
    %v75 = vmul.f32 %v52, %v74
    %v76 = vmul.f32 %v53, %v74
    %v77 = vadd.f32 %v69, %v75
    %v78 = vadd.f32 %v70, %v76
    %v79 = vrot.slane %v52, 1
    %v80 = vrot.slane %v53, 1
    %vm81 = vcmp.lt.s32.totalorder %v50, 7
    %v82 = vsel %vm81, %v79, %v80
    %v83 = vsel %vm81, %v80, %v79
    %vm84 = vcmp.lt.s32.totalorder %v50, 15
    %vm85 = vcmp.lt.s32.totalorder %v51, 15
    %v86 = vsel %vm84, %v82, 0.0
    %v87 = vsel %vm85, %v83, 0.0
    %v88 = vlaneseq
    %v89 = vshrl.u32 %v88, 7
    %v90 = vsub.s32 2, %v89
    %v91 = vrot.slane %v41, %v90
    %v92 = vmul.f32 %v86, %v91
    %v93 = vmul.f32 %v87, %v91
    %v94 = vadd.f32 %v77, %v92
    %v95 = vadd.f32 %v78, %v93
    %v96 = vmul.f32 %v94, 0.5
    %v97 = vmul.f32 %v95, 0.5
    %v98 = vmul.f32 %v94, 0.70710677
    %v99 = vmul.f32 %v95, 0.70710677
    %v100 = verf.f32.pop %v98
    %v101 = verf.f32.pop %v99
    %v102 = vadd.f32 %v100, 1.0
    %v103 = vadd.f32 %v101, 1.0
    %v104 = vmul.f32 %v96, %v102
    %v105 = vmul.f32 %v97, %v103
    %106 = vst [vmem:[#allocation7] sm:$0xff] %v104
    %107 = vst [vmem:[#allocation7 + $0x8] sm:$0xff] %v105
    %s108 = scalar_lea.vmem [#allocation2], 16
    %v109 = vld [vmem:[%s108] sm:$0xff]
    %v110 = vld [vmem:[%s108 + $0x8] sm:$0xff]
    %v111 = vrot.slane %v109, 7
    %v112 = vrot.slane %v110, 7
    %v113 = vsel %vm56, %v111, %v112
    %v114 = vsel %vm56, %v112, %v111
    %v115 = vsel %vm59, %v114, 0.0
    %v116 = vsel %vm60, %v113, 0.0
    %v117 = vmul.f32 %v115, %v66
    %v118 = vmul.f32 %v116, %v66
    %v119 = vadd.f32 %v47, %v117
    %v120 = vadd.f32 %v47, %v118
    %v121 = vmul.f32 %v109, %v74
    %v122 = vmul.f32 %v110, %v74
    %v123 = vadd.f32 %v119, %v121
    %v124 = vadd.f32 %v120, %v122
    %v125 = vrot.slane %v109, 1
    %v126 = vrot.slane %v110, 1
    %v127 = vsel %vm81, %v125, %v126
    %v128 = vsel %vm81, %v126, %v125
    %v129 = vsel %vm84, %v127, 0.0
    %v130 = vsel %vm85, %v128, 0.0
    %v131 = vmul.f32 %v129, %v91
    %v132 = vmul.f32 %v130, %v91
    %v133 = vadd.f32 %v123, %v131
    %v134 = vadd.f32 %v124, %v132
    %v135 = vmul.f32 %v133, 0.5
    %v136 = vmul.f32 %v134, 0.5
    %v137 = vmul.f32 %v133, 0.70710677
    %v138 = vmul.f32 %v134, 0.70710677
    %v139 = verf.f32.pop %v137
    %v140 = verf.f32.pop %v138
    %v141 = vadd.f32 %v139, 1.0
    %v142 = vadd.f32 %v140, 1.0
    %v143 = vmul.f32 %v135, %v141
    %v144 = vmul.f32 %v136, %v142
    %s145 = scalar_lea.vmem [#allocation7], 16
    %146 = vst [vmem:[%s145] sm:$0xff] %v143
    %147 = vst [vmem:[%s145 + $0x8] sm:$0xff] %v144
    // Predicated region
    $region22: #{tpu_custom_call.1} parent=1 // pred_check
      _
    $region23: #{tpu_custom_call.1} parent=1 // pred_check_branch
      %149 = sbr.rel (0) target = $region25
    $region24: #{tpu_custom_call.1} parent=1 // pred_region
      %s151 = ssub.s32 512, 512
      %152 = vsyncadd [#allocation4], %s151
      %s153 = sshll.u32 [#allocation7], 4
      %s154 = int_to_ptr.vmem [resolvable:$true] %s153
      %159 = dma.vmem_to_hbm [thread:$0]  %s154, 512, %s3, [#allocation4], 128, 128, 8
    $region25: #{tpu_custom_call.1} parent=1 // pred_fallthru
      _
    // Predicated region
    $region26: #{tpu_custom_call.1} parent=1 // pred_check
      _
    $region27: #{tpu_custom_call.1} parent=1 // pred_check_branch
      %161 = sbr.rel (0) target = $region29
    $region28: #{tpu_custom_call.1} parent=1 // pred_region
      %162 = dma.done [#allocation4], 512
    $region29: #{tpu_custom_call.1} parent=1 // pred_fallthru
      _
    %163 = vsyncpa [#allocation3], 1
    %164 = vsyncpa [#allocation6], 1
    %165 = vsyncpa [#allocation4], 1

</llo_original>
